<compile_context>
chip_gen: v7x
topology: tpu7x:2x2x1
jax: 0.10.0
libtpu: 0.0.40
codegen_flags: <defaults>
</compile_context>

<pallas_src>
import jax
import jax.numpy as jnp
from jax.experimental import pallas as pl
from jax.experimental.pallas import tpu as pltpu

_IN = 64
_H1 = 128
_H2 = 64
_H2P = 128        # fc2 output padded to full lane width (zero columns)
_OUT = 10
_OUT_PAD = 128    # lane-dense padded fc3 / output width
_NEG = -1e30      # mask value for padded logit columns


def _mlp_kernel(x_ref, w1_ref, w2_ref, w3_ref, b_ref, o_ref):
    # x arrives as f32 (no separate wrapper cast pass); cast to bf16 for the MXU.
    x = x_ref[...].astype(jnp.bfloat16)

    b1 = b_ref[0:1, :]          # (1, 128)
    b2 = b_ref[1:2, :]          # (1, 128); cols >= 64 are 0
    b3 = b_ref[2:3, :]          # (1, 128); cols >= 10 are -1e30

    # fc1 + relu  (bf16 MXU inputs, f32 accumulate; elementwise in f32)
    h1 = jnp.dot(x, w1_ref[...], preferred_element_type=jnp.float32) + b1
    h1 = jnp.maximum(h1, 0.0)

    # fc2 + relu  (output padded to 128 lanes; padded cols = relu(0) = 0)
    h2 = jnp.dot(h1.astype(jnp.bfloat16), w2_ref[...],
                 preferred_element_type=jnp.float32) + b2
    h2 = jnp.maximum(h2, 0.0)

    # fc3 (128-deep K, 128-wide padded output; padded columns ~ -1e30)
    logits = jnp.dot(h2.astype(jnp.bfloat16), w3_ref[...],
                     preferred_element_type=jnp.float32) + b3

    # numerically-stable log_softmax over the (masked) 128 lanes
    m = jnp.max(logits, axis=-1, keepdims=True)
    shifted = logits - m
    lse = jnp.log(jnp.sum(jnp.exp(shifted), axis=-1, keepdims=True))
    o_ref[...] = (shifted - lse).astype(o_ref.dtype)   # bf16 lane-dense store


def _round_up(n, m):
    return (n + m - 1) // m * m


def _pick_batch_tile(B):
    """Batch tile (rows). Multiples of 16; >=2 grid steps for medium/large B."""
    if B <= 16:
        return _round_up(max(B, 1), 16)          # tiny batch: one small tile
    cap = 1024  # generation-safe: ~4 MB VMEM footprint, fits v5e default scoped VMEM
    if B <= 2 * cap:
        # split roughly in half so the 'parallel' axis spans both v7x TensorCores
        return _round_up(pl.cdiv(B, 2), 16)
    return cap


def prepare_params(params):
    """Pack natural-shape params into kernel-ready arrays (do this once)."""
    w1, b1, w2, b2, w3, b3 = params
    w1p = w1.astype(jnp.bfloat16)                                            # (64, 128)
    w2p = (jnp.zeros((_H1, _H2P), jnp.float32)
           .at[:, :_H2].set(w2)).astype(jnp.bfloat16)                        # (128, 128)
    w3p = (jnp.zeros((_H2P, _OUT_PAD), jnp.float32)
           .at[:_H2, :_OUT].set(w3)).astype(jnp.bfloat16)                    # (128, 128)
    # pack biases into one (3, 128) f32 array
    b = jnp.zeros((3, _OUT_PAD), jnp.float32)
    b = b.at[0, :_H1].set(b1.reshape(-1))
    b = b.at[1, :_H2].set(b2.reshape(-1))
    b3_row = jnp.full((_OUT_PAD,), _NEG, jnp.float32).at[:_OUT].set(b3.reshape(-1))
    b = b.at[2, :].set(b3_row)
    return w1p, w2p, w3p, b


@jax.jit
def simple_net_forward(x, packed):
    """x: (B, C, H, W) with C*H*W == 64 (or already (B, 64)). Returns (B, 10) f32 log-probs."""
    w1, w2p, w3p, b = packed
    xb = x.reshape(x.shape[0], -1)            # torch.flatten(x, 1); stays f32
    B = xb.shape[0]
    assert xb.shape[1] == _IN

    bM = _pick_batch_tile(B)
    B_pad = _round_up(B, bM)
    if B_pad != B:                            # only pad when actually needed
        xb = jnp.pad(xb, ((0, B_pad - B), (0, 0)))

    n_steps = B_pad // bM
    weight_bytes = (_IN * _H1 + _H1 * _H2P + _H2P * _OUT_PAD) * 2 + 3 * _OUT_PAD * 4
    cost = pl.CostEstimate(
        flops=2 * B_pad * (_IN * _H1 + _H1 * _H2P + _H2P * _OUT_PAD),
        transcendentals=B_pad * (_OUT_PAD + 1),
        bytes_accessed=B_pad * _IN * 4 + B_pad * _OUT_PAD * 2 + weight_bytes,
    )

    out = pl.pallas_call(
        _mlp_kernel,
        out_shape=jax.ShapeDtypeStruct((B_pad, _OUT_PAD), jnp.bfloat16),
        grid=(n_steps,),
        in_specs=[
            pl.BlockSpec((bM, _IN), lambda i: (i, 0)),          # x tile (pipelined, f32)
            pl.BlockSpec((_IN, _H1), lambda i: (0, 0)),         # w1 resident
            pl.BlockSpec((_H1, _H2P), lambda i: (0, 0)),        # w2 (padded) resident
            pl.BlockSpec((_H2P, _OUT_PAD), lambda i: (0, 0)),   # w3 (padded) resident
            pl.BlockSpec((3, _OUT_PAD), lambda i: (0, 0)),      # packed biases resident
        ],
        out_specs=pl.BlockSpec((bM, _OUT_PAD), lambda i: (i, 0)),
        compiler_params=pltpu.CompilerParams(
            dimension_semantics=("parallel",),
            # explicit scoped-VMEM budget; footprint at bM=1024 is only a few MB,
            # well under v7x's 64 MiB physical / 32 MiB default scoped VMEM.
            vmem_limit_bytes=32 * 1024 * 1024,
        ),
        cost_estimate=cost,
    )(xb, w1, w2p, w3p, b)

    return out[:B, :_OUT].astype(jnp.float32)


def init_params(key):
    """PyTorch-style uniform(-1/sqrt(fan_in), 1/sqrt(fan_in)). Weights stored [in, out]."""
    ks = jax.random.split(key, 6)

    def linear(kw, kb, fan_in, fan_out):
        bound = 1.0 / jnp.sqrt(jnp.float32(fan_in))
        w = jax.random.uniform(kw, (fan_in, fan_out), jnp.float32, -bound, bound)
        b = jax.random.uniform(kb, (fan_out,), jnp.float32, -bound, bound)
        return w, b

    w1, b1 = linear(ks[0], ks[1], _IN, _H1)
    w2, b2 = linear(ks[2], ks[3], _H1, _H2)
    w3, b3 = linear(ks[4], ks[5], _H2, _OUT)
    return (w1, b1, w2, b2, w3, b3)


def reference_forward(x, params):
    """Pure-JAX reference using the same bf16 matmul inputs / f32 accumulation."""
    w1, b1, w2, b2, w3, b3 = params
    bf = jnp.bfloat16
    xb = x.reshape(x.shape[0], -1)
    h1 = jnp.maximum(jnp.dot(xb.astype(bf), w1.astype(bf),
                             preferred_element_type=jnp.float32) + b1, 0.0)
    h2 = jnp.maximum(jnp.dot(h1.astype(bf), w2.astype(bf),
                             preferred_element_type=jnp.float32) + b2, 0.0)
    logits = jnp.dot(h2.astype(bf), w3.astype(bf),
                     preferred_element_type=jnp.float32) + b3
    return jax.nn.log_softmax(logits, axis=-1)


if __name__ == "__main__":
    key = jax.random.PRNGKey(0)
    k_x, k_p = jax.random.split(key)

    # batch=8, input flattens to 64 features (1 x 8 x 8), matching nn.Linear(64, .)
    x = jax.random.normal(k_x, (8, 1, 8, 8), dtype=jnp.float32)
    params = init_params(k_p)
    packed = prepare_params(params)

    out = simple_net_forward(x, packed)
    out = jax.block_until_ready(out)

    assert out.shape == (8, 10), out.shape
    # rows of log_softmax must exponentiate-sum to ~1 (bf16 output -> looser tol)
    assert jnp.allclose(jnp.sum(jnp.exp(out), axis=1), 1.0, atol=1e-2)

    # cross-check against a pure-JAX reference with the same bf16 matmul inputs
    # (kernel output is bf16, ~3 significant digits -> 2e-2 tolerance)
    ref = reference_forward(x, params)
    assert jnp.allclose(out, ref, atol=2e-2, rtol=2e-2), float(jnp.max(jnp.abs(out - ref)))

    print("KERNEL_OK")
</pallas_src>

<mosaic_0001>
module attributes {stable_mosaic.version = 11 : i64} {
  func.func @_mlp_kernel(%arg0: i32, %arg1: memref<16x64xf32, #tpu.memory_space<vmem>>, %arg2: memref<64x128xbf16, #tpu.memory_space<vmem>>, %arg3: memref<128x128xbf16, #tpu.memory_space<vmem>>, %arg4: memref<128x128xbf16, #tpu.memory_space<vmem>>, %arg5: memref<3x128xf32, #tpu.memory_space<vmem>>, %arg6: memref<16x128xbf16, #tpu.memory_space<vmem>>) attributes {dimension_semantics = [#tpu.dimension_semantics<parallel>], iteration_bounds = array<i64: 1>, scalar_prefetch = 0 : i64, scratch_operands = 0 : i64, tpu.core_type = #tpu.core_type<tc>, window_params = [{transform_indices = @transform_0, window_bounds = array<i64: 16, 64>}, {pipeline_mode = #tpu.pipeline_mode<synchronous>, transform_indices = @transform_1, window_bounds = array<i64: 64, 128>}, {pipeline_mode = #tpu.pipeline_mode<synchronous>, transform_indices = @transform_2, window_bounds = array<i64: 128, 128>}, {pipeline_mode = #tpu.pipeline_mode<synchronous>, transform_indices = @transform_3, window_bounds = array<i64: 128, 128>}, {pipeline_mode = #tpu.pipeline_mode<synchronous>, transform_indices = @transform_4, window_bounds = array<i64: 3, 128>}, {transform_indices = @transform_5, window_bounds = array<i64: 16, 128>}]} {
    %c0 = arith.constant 0 : index
    %c0_0 = arith.constant 0 : index
    %0 = vector.load %arg1[%c0, %c0_0] : memref<16x64xf32, #tpu.memory_space<vmem>>, vector<16x64xf32>
    %1 = arith.truncf %0 : vector<16x64xf32> to vector<16x64xbf16>
    %c0_1 = arith.constant 0 : index
    %c0_2 = arith.constant 0 : index
    %2 = vector.load %arg5[%c0_1, %c0_2] : memref<3x128xf32, #tpu.memory_space<vmem>>, vector<1x128xf32>
    %c1 = arith.constant 1 : index
    %c0_3 = arith.constant 0 : index
    %3 = vector.load %arg5[%c1, %c0_3] : memref<3x128xf32, #tpu.memory_space<vmem>>, vector<1x128xf32>
    %c2 = arith.constant 2 : index
    %c0_4 = arith.constant 0 : index
    %4 = vector.load %arg5[%c2, %c0_4] : memref<3x128xf32, #tpu.memory_space<vmem>>, vector<1x128xf32>
    %c0_5 = arith.constant 0 : index
    %c0_6 = arith.constant 0 : index
    %5 = vector.load %arg2[%c0_5, %c0_6] : memref<64x128xbf16, #tpu.memory_space<vmem>>, vector<64x128xbf16>
    %cst = arith.constant dense<0.000000e+00> : vector<16x128xf32>
    %6 = tpu.matmul %1, %5, %cst {dimension_numbers = #tpu.dot_dimension_numbers<[1], [0], [0], [1], [0, 0, 1, 1], [], []>} : vector<16x64xbf16>, vector<64x128xbf16>, vector<16x128xf32> -> vector<16x128xf32>
    %7 = vector.broadcast %2 : vector<1x128xf32> to vector<16x128xf32>
    %8 = arith.addf %6, %7 : vector<16x128xf32>
    %cst_7 = arith.constant 0.000000e+00 : f32
    %9 = vector.broadcast %cst_7 : f32 to vector<16x128xf32>
    %10 = arith.maximumf %8, %9 : vector<16x128xf32>
    %11 = arith.truncf %10 : vector<16x128xf32> to vector<16x128xbf16>
    %c0_8 = arith.constant 0 : index
    %c0_9 = arith.constant 0 : index
    %12 = vector.load %arg3[%c0_8, %c0_9] : memref<128x128xbf16, #tpu.memory_space<vmem>>, vector<128x128xbf16>
    %cst_10 = arith.constant dense<0.000000e+00> : vector<16x128xf32>
    %13 = tpu.matmul %11, %12, %cst_10 {dimension_numbers = #tpu.dot_dimension_numbers<[1], [0], [0], [1], [0, 0, 1, 1], [], []>} : vector<16x128xbf16>, vector<128x128xbf16>, vector<16x128xf32> -> vector<16x128xf32>
    %14 = vector.broadcast %3 : vector<1x128xf32> to vector<16x128xf32>
    %15 = arith.addf %13, %14 : vector<16x128xf32>
    %cst_11 = arith.constant 0.000000e+00 : f32
    %16 = vector.broadcast %cst_11 : f32 to vector<16x128xf32>
    %17 = arith.maximumf %15, %16 : vector<16x128xf32>
    %18 = arith.truncf %17 : vector<16x128xf32> to vector<16x128xbf16>
    %c0_12 = arith.constant 0 : index
    %c0_13 = arith.constant 0 : index
    %19 = vector.load %arg4[%c0_12, %c0_13] : memref<128x128xbf16, #tpu.memory_space<vmem>>, vector<128x128xbf16>
    %cst_14 = arith.constant dense<0.000000e+00> : vector<16x128xf32>
    %20 = tpu.matmul %18, %19, %cst_14 {dimension_numbers = #tpu.dot_dimension_numbers<[1], [0], [0], [1], [0, 0, 1, 1], [], []>} : vector<16x128xbf16>, vector<128x128xbf16>, vector<16x128xf32> -> vector<16x128xf32>
    %21 = vector.broadcast %4 : vector<1x128xf32> to vector<16x128xf32>
    %22 = arith.addf %20, %21 : vector<16x128xf32>
    %cst_15 = arith.constant dense<0xFF800000> : vector<16xf32>
    %23 = vector.multi_reduction <maximumf>, %22, %cst_15 [1] : vector<16x128xf32> to vector<16xf32>
    %24 = vector.shape_cast %23 : vector<16xf32> to vector<16x1xf32>
    %25 = vector.broadcast %24 : vector<16x1xf32> to vector<16x128xf32>
    %26 = arith.subf %22, %25 : vector<16x128xf32>
    %27 = math.exp %26 : vector<16x128xf32>
    %cst_16 = arith.constant dense<0.000000e+00> : vector<16xf32>
    %28 = vector.multi_reduction <add>, %27, %cst_16 [1] : vector<16x128xf32> to vector<16xf32>
    %29 = vector.shape_cast %28 : vector<16xf32> to vector<16x1xf32>
    %30 = math.log %29 : vector<16x1xf32>
    %31 = vector.broadcast %30 : vector<16x1xf32> to vector<16x128xf32>
    %32 = arith.subf %26, %31 : vector<16x128xf32>
    %33 = arith.truncf %32 : vector<16x128xf32> to vector<16x128xbf16>
    %c0_17 = arith.constant 0 : index
    %c0_18 = arith.constant 0 : index
    %34 = vector.load %arg6[%c0_17, %c0_18] : memref<16x128xbf16, #tpu.memory_space<vmem>>, vector<16x128xbf16>
    tpu.vector_store %arg6[%c0_17, %c0_18], %33 {strides = array<i32>} : memref<16x128xbf16, #tpu.memory_space<vmem>>, vector<16x128xbf16>,
    return
  }
  func.func @transform_0(%arg0: i32) -> (i32, i32) {
    %c0_i32 = arith.constant 0 : i32
    %c0_i32_0 = arith.constant 0 : i32
    return %arg0, %c0_i32 : i32, i32
  }
  func.func @transform_1(%arg0: i32) -> (i32, i32) {
    %c0_i32 = arith.constant 0 : i32
    %c0_i32_0 = arith.constant 0 : i32
    %c0_i32_1 = arith.constant 0 : i32
    return %c0_i32, %c0_i32_0 : i32, i32
  }
  func.func @transform_2(%arg0: i32) -> (i32, i32) {
    %c0_i32 = arith.constant 0 : i32
    %c0_i32_0 = arith.constant 0 : i32
    %c0_i32_1 = arith.constant 0 : i32
    return %c0_i32, %c0_i32_0 : i32, i32
  }
  func.func @transform_3(%arg0: i32) -> (i32, i32) {
    %c0_i32 = arith.constant 0 : i32
    %c0_i32_0 = arith.constant 0 : i32
    %c0_i32_1 = arith.constant 0 : i32
    return %c0_i32, %c0_i32_0 : i32, i32
  }
  func.func @transform_4(%arg0: i32) -> (i32, i32) {
    %c0_i32 = arith.constant 0 : i32
    %c0_i32_0 = arith.constant 0 : i32
    %c0_i32_1 = arith.constant 0 : i32
    return %c0_i32, %c0_i32_0 : i32, i32
  }
  func.func @transform_5(%arg0: i32) -> (i32, i32) {
    %c0_i32 = arith.constant 0 : i32
    %c0_i32_0 = arith.constant 0 : i32
    return %arg0, %c0_i32 : i32, i32
  }
}

</mosaic_0001>

<llo_original>
// kernel: simple_net_forward.1
$region0: #{simple_net_forward.1}
  #allocation0 [shape = 'u32[]', space=smem, size = 0x4, offset = 0x4, fixed_abs, tag = 'smem constant byte address 0x4 - core index']
  #allocation1 [shape = 'u32[144,128]{1,0:T(1,128)}', space=vmem, size = 0x12000, scoped, tag = 'internal scratch']
  %s0 = inlined_call_operand.vmem [shape: f32[16,64], index: 0, kind: input, shape index: {}]
  %s1 = inlined_call_operand.vmem [shape: bf16[64,128], index: 1, kind: input, shape index: {}]
  %s2 = inlined_call_operand.vmem [shape: bf16[128,128], index: 2, kind: input, shape index: {}]
  %s3 = inlined_call_operand.hbm [shape: bf16[128,128], index: 3, kind: input, shape index: {}]
  %s4 = inlined_call_operand.vmem [shape: f32[3,128], index: 4, kind: input, shape index: {}]
  %s5 = inlined_call_operand.vmem [shape: bf16[16,128], index: 5, kind: output, shape index: {}]
  %s6 = sld [smem:[#allocation0]]
  $region34: #{simple_net_forward.1} parent=0
    _
  %s8 = ssub.s32 1, %s6
  %s9 = scalar_select 0, %s8, %s6
  $region1: #{simple_net_forward.1} parent=0
    #allocation2 [shape = 'u8[32768]{0}', space=vmem, size = 0x8000, scoped, tag = 'input window, operand 3, single buffered']
    #allocation3 [shape = 's32[1]{0}', space=sflag, size = 0x4, scoped, tag = 'scoped memory for simple_net_forward.1']
    %10 = vsyncpa [#allocation3], 0
    // Predicated region
    $region2: #{simple_net_forward.1} parent=1 // pred_check
      _
    $region3: #{simple_net_forward.1} parent=1 // pred_check_branch
      %12 = sbr.rel (0) target = $region5
    $region4: #{simple_net_forward.1} parent=1 // pred_region
      _
    $region5: #{simple_net_forward.1} parent=1 // pred_fallthru
      _
    // Predicated region
    $region6: #{simple_net_forward.1} parent=1 // pred_check
      _
    $region7: #{simple_net_forward.1} parent=1 // pred_check_branch
      %14 = sbr.rel (0) target = $region9
    $region8: #{simple_net_forward.1} parent=1 // pred_region
      _
    $region9: #{simple_net_forward.1} parent=1 // pred_fallthru
      _
    // Predicated region
    $region10: #{simple_net_forward.1} parent=1 // pred_check
      _
    $region11: #{simple_net_forward.1} parent=1 // pred_check_branch
      %16 = sbr.rel (0) target = $region13
    $region12: #{simple_net_forward.1} parent=1 // pred_region
      _
    $region13: #{simple_net_forward.1} parent=1 // pred_fallthru
      _
    // Predicated region
    $region14: #{simple_net_forward.1} parent=1 // pred_check
      _
    $region15: #{simple_net_forward.1} parent=1 // pred_check_branch
      %18 = sbr.rel (0) target = $region17
    $region16: #{simple_net_forward.1} parent=1 // pred_region
      %s20 = ssub.s32 1024, 1024
      %21 = vsyncadd [#allocation3], %s20
      %s22 = sshll.u32 [#allocation2], 4
      %s23 = int_to_ptr.vmem [resolvable:$true] %s22
      %28 = dma.hbm_to_vmem [thread:$0]  %s3, 1024, %s23, [#allocation3], 64, 64, 4
    $region17: #{simple_net_forward.1} parent=1 // pred_fallthru
      _
    // Predicated region
    $region18: #{simple_net_forward.1} parent=1 // pred_check
      _
    $region19: #{simple_net_forward.1} parent=1 // pred_check_branch
      %30 = sbr.rel (0) target = $region21
    $region20: #{simple_net_forward.1} parent=1 // pred_region
      _
    $region21: #{simple_net_forward.1} parent=1 // pred_fallthru
      _
    // Predicated region
    $region22: #{simple_net_forward.1} parent=1 // pred_check
      _
    $region23: #{simple_net_forward.1} parent=1 // pred_check_branch
      %32 = sbr.rel (0) target = $region25
    $region24: #{simple_net_forward.1} parent=1 // pred_region
      %33 = dma.done [#allocation3], 1024
    $region25: #{simple_net_forward.1} parent=1 // pred_fallthru
      _
    %v35 = vld [vmem:[%s0] sm:$0xff]
    %v36 = vld [vmem:[%s0 + $0x8] sm:$0xff]
    %v37 = vpack.c.bf16 %v36, %v35
    %v38 = vld [vmem:[%s4] sm:$0x1]
    %v39 = vld [vmem:[%s4 + $0x1] sm:$0x1]
    %v40 = vld [vmem:[%s4 + $0x2] sm:$0x1]
    %v41 = vld [vmem:[%s1] sm:$0xf]
    %v42 = vld [vmem:[%s1 + $0x4] sm:$0xf]
    %v43 = vld [vmem:[%s1 + $0x8] sm:$0xf]
    %v44 = vld [vmem:[%s1 + $0xc] sm:$0xf]
    %v45 = vld [vmem:[%s1 + $0x10] sm:$0xf]
    %v46 = vld [vmem:[%s1 + $0x14] sm:$0xf]
    %v47 = vld [vmem:[%s1 + $0x18] sm:$0xf]
    %v48 = vld [vmem:[%s1 + $0x1c] sm:$0xf]
    %v49 = vlaneseq
    %v50 = vshrl.u32 %v49, 7
    %v51 = vsub.s32 0, %v50
    %v52 = vrot.slane %v38, %v51
    %v61 = vunpack.c.l.b16 %v41
    %v62 = vunpack.c.l.b16 %v42
    %v63 = vunpack.c.l.b16 %v43
    %v64 = vunpack.c.l.b16 %v44
    %v65 = vunpack.c.l.b16 %v45
    %v66 = vunpack.c.l.b16 %v46
    %v67 = vunpack.c.l.b16 %v47
    %v68 = vunpack.c.l.b16 %v48
    %v69 = vpack.c.b16 %v62, %v61
    %v70 = vpack.c.b16 %v64, %v63
    %v71 = vpack.c.b16 %v66, %v65
    %v72 = vpack.c.b16 %v68, %v67
    %vm77 = vcmask 523264
    %v79 = vsel %vm77, %v37, 0
    %81 = vmatprep.subr.bf16.mxu0 0
    %82 = vmatpush1.bf16.msra.mxu0 %v69
    %83 = vmatprep.subr.bf16.mxu0 0
    %84 = vmatpush1.bf16.msra.mxu0 %v70
    %85 = vmatprep.subr.bf16.mxu0 0
    %86 = vmatpush1.bf16.msra.mxu0 %v71
    %87 = vmatprep.subr.bf16.mxu0 0
    %88 = vmatpush1.bf16.msra.mxu0 %v72
    %89 = vmatprep.subr.bf16.mxu0 0
    %90 = vmatpush1.bf16.msra.mxu0 0
    %91 = vmatprep.subr.bf16.mxu0 0
    %92 = vmatpush1.bf16.msra.mxu0 0
    %93 = vmatprep.subr.bf16.mxu0 0
    %94 = vmatpush1.bf16.msra.mxu0 0
    %95 = vmatprep.subr.bf16.mxu0 0
    %96 = vmatpush1.bf16.msra.mxu0 0
    %97 = vmatprep.subr.bf16.mxu0 0
    %98 = vmatpush1.bf16.msra.mxu0 0
    %99 = vmatprep.subr.bf16.mxu0 0
    %100 = vmatpush1.bf16.msra.mxu0 0
    %101 = vmatprep.subr.bf16.mxu0 0
    %102 = vmatpush1.bf16.msra.mxu0 0
    %103 = vmatprep.subr.bf16.mxu0 0
    %104 = vmatpush1.bf16.msra.mxu0 0
    %105 = vmatprep.subr.bf16.mxu0 0
    %106 = vmatpush1.bf16.msra.mxu0 0
    %107 = vmatprep.subr.bf16.mxu0 0
    %108 = vmatpush1.bf16.msra.mxu0 0
    %109 = vmatprep.subr.bf16.mxu0 0
    %110 = vmatpush1.bf16.msra.mxu0 0
    %111 = vmatprep.subr.bf16.mxu0 0
    %112 = vmatpush1.bf16.msra.mxu0 0
    %113 = vmatprep.mubr.bf16.mxu0 0
    %114 = vmatmul.mubr.bf16.gmra.mrb[0].mxu0 %v79
    %v115 = vpop.f32.mrb[0].mxu0
    %v116 = vadd.f32 %v52, %v115
    %v117 = vpop.f32.mrb[0].mxu0
    %v118 = vpop.f32.mrb[0].mxu0
    %v119 = vadd.f32 %v52, %v118
    %v120 = vpop.f32.mrb[0].mxu0
    %121 = vdwg.mxu0
    %v122 = vmax.f32 %v116, 0.0
    %v123 = vmax.f32 %v119, 0.0
    %v124 = vpack.c.bf16 %v123, %v122
    %v125 = vld [vmem:[%s2] sm:$0xf]
    %v126 = vld [vmem:[%s2 + $0x4] sm:$0xf]
    %v127 = vld [vmem:[%s2 + $0x8] sm:$0xf]
    %v128 = vld [vmem:[%s2 + $0xc] sm:$0xf]
    %v129 = vld [vmem:[%s2 + $0x10] sm:$0xf]
    %v130 = vld [vmem:[%s2 + $0x14] sm:$0xf]
    %v131 = vld [vmem:[%s2 + $0x18] sm:$0xf]
    %v132 = vld [vmem:[%s2 + $0x1c] sm:$0xf]
    %v133 = vld [vmem:[%s2 + $0x20] sm:$0xf]
    %v134 = vld [vmem:[%s2 + $0x24] sm:$0xf]
    %v135 = vld [vmem:[%s2 + $0x28] sm:$0xf]
    %v136 = vld [vmem:[%s2 + $0x2c] sm:$0xf]
    %v137 = vld [vmem:[%s2 + $0x30] sm:$0xf]
    %v138 = vld [vmem:[%s2 + $0x34] sm:$0xf]
    %v139 = vld [vmem:[%s2 + $0x38] sm:$0xf]
    %v140 = vld [vmem:[%s2 + $0x3c] sm:$0xf]
    %v141 = vlaneseq
    %v142 = vshrl.u32 %v141, 7
    %v143 = vsub.s32 0, %v142
    %v144 = vrot.slane %v39, %v143
    %v161 = vunpack.c.l.b16 %v125
    %v162 = vunpack.c.l.b16 %v126
    %v163 = vunpack.c.l.b16 %v127
    %v164 = vunpack.c.l.b16 %v128
    %v165 = vunpack.c.l.b16 %v129
    %v166 = vunpack.c.l.b16 %v130
    %v167 = vunpack.c.l.b16 %v131
    %v168 = vunpack.c.l.b16 %v132
    %v169 = vunpack.c.l.b16 %v133
    %v170 = vunpack.c.l.b16 %v134
    %v171 = vunpack.c.l.b16 %v135
    %v172 = vunpack.c.l.b16 %v136
    %v173 = vunpack.c.l.b16 %v137
    %v174 = vunpack.c.l.b16 %v138
    %v175 = vunpack.c.l.b16 %v139
    %v176 = vunpack.c.l.b16 %v140
    %v177 = vpack.c.b16 %v162, %v161
    %v178 = vpack.c.b16 %v164, %v163
    %v179 = vpack.c.b16 %v166, %v165
    %v180 = vpack.c.b16 %v168, %v167
    %v181 = vpack.c.b16 %v170, %v169
    %v182 = vpack.c.b16 %v172, %v171
    %v183 = vpack.c.b16 %v174, %v173
    %v184 = vpack.c.b16 %v176, %v175
    %193 = vmatprep.subr.bf16.mxu0 0
    %194 = vmatpush1.bf16.msra.mxu0 %v177
    %195 = vmatprep.subr.bf16.mxu0 0
    %196 = vmatpush1.bf16.msra.mxu0 %v178
    %197 = vmatprep.subr.bf16.mxu0 0
    %198 = vmatpush1.bf16.msra.mxu0 %v179
    %199 = vmatprep.subr.bf16.mxu0 0
    %200 = vmatpush1.bf16.msra.mxu0 %v180
    %201 = vmatprep.subr.bf16.mxu0 0
    %202 = vmatpush1.bf16.msra.mxu0 %v181
    %203 = vmatprep.subr.bf16.mxu0 0
    %204 = vmatpush1.bf16.msra.mxu0 %v182
    %205 = vmatprep.subr.bf16.mxu0 0
    %206 = vmatpush1.bf16.msra.mxu0 %v183
    %207 = vmatprep.subr.bf16.mxu0 0
    %208 = vmatpush1.bf16.msra.mxu0 %v184
    %209 = vmatprep.subr.bf16.mxu0 0
    %210 = vmatpush1.bf16.msra.mxu0 0
    %211 = vmatprep.subr.bf16.mxu0 0
    %212 = vmatpush1.bf16.msra.mxu0 0
    %213 = vmatprep.subr.bf16.mxu0 0
    %214 = vmatpush1.bf16.msra.mxu0 0
    %215 = vmatprep.subr.bf16.mxu0 0
    %216 = vmatpush1.bf16.msra.mxu0 0
    %217 = vmatprep.subr.bf16.mxu0 0
    %218 = vmatpush1.bf16.msra.mxu0 0
    %219 = vmatprep.subr.bf16.mxu0 0
    %220 = vmatpush1.bf16.msra.mxu0 0
    %221 = vmatprep.subr.bf16.mxu0 0
    %222 = vmatpush1.bf16.msra.mxu0 0
    %223 = vmatprep.subr.bf16.mxu0 0
    %224 = vmatpush1.bf16.msra.mxu0 0
    %225 = vmatprep.mubr.bf16.mxu0 0
    %226 = vmatmul.mubr.bf16.gmra.mrb[0].mxu0 %v124
    %v227 = vpop.f32.mrb[0].mxu0
    %v228 = vadd.f32 %v144, %v227
    %v229 = vpop.f32.mrb[0].mxu0
    %v230 = vpop.f32.mrb[0].mxu0
    %v231 = vadd.f32 %v144, %v230
    %v232 = vpop.f32.mrb[0].mxu0
    %233 = vdwg.mxu0
    %v234 = vmax.f32 %v228, 0.0
    %v235 = vmax.f32 %v231, 0.0
    %v236 = vpack.c.bf16 %v235, %v234
    %v237 = vld [vmem:[#allocation2] sm:$0xf]
    %v238 = vld [vmem:[#allocation2 + $0x4] sm:$0xf]
    %v239 = vld [vmem:[#allocation2 + $0x8] sm:$0xf]
    %v240 = vld [vmem:[#allocation2 + $0xc] sm:$0xf]
    %v241 = vld [vmem:[#allocation2 + $0x10] sm:$0xf]
    %v242 = vld [vmem:[#allocation2 + $0x14] sm:$0xf]
    %v243 = vld [vmem:[#allocation2 + $0x18] sm:$0xf]
    %v244 = vld [vmem:[#allocation2 + $0x1c] sm:$0xf]
    %v245 = vld [vmem:[#allocation2 + $0x20] sm:$0xf]
    %v246 = vld [vmem:[#allocation2 + $0x24] sm:$0xf]
    %v247 = vld [vmem:[#allocation2 + $0x28] sm:$0xf]
    %v248 = vld [vmem:[#allocation2 + $0x2c] sm:$0xf]
    %v249 = vld [vmem:[#allocation2 + $0x30] sm:$0xf]
    %v250 = vld [vmem:[#allocation2 + $0x34] sm:$0xf]
    %v251 = vld [vmem:[#allocation2 + $0x38] sm:$0xf]
    %v252 = vld [vmem:[#allocation2 + $0x3c] sm:$0xf]
    %v253 = vlaneseq
    %v254 = vshrl.u32 %v253, 7
    %v255 = vsub.s32 0, %v254
    %v256 = vrot.slane %v40, %v255
    %v273 = vunpack.c.l.b16 %v237
    %v274 = vunpack.c.l.b16 %v238
    %v275 = vunpack.c.l.b16 %v239
    %v276 = vunpack.c.l.b16 %v240
    %v277 = vunpack.c.l.b16 %v241
    %v278 = vunpack.c.l.b16 %v242
    %v279 = vunpack.c.l.b16 %v243
    %v280 = vunpack.c.l.b16 %v244
    %v281 = vunpack.c.l.b16 %v245
    %v282 = vunpack.c.l.b16 %v246
    %v283 = vunpack.c.l.b16 %v247
    %v284 = vunpack.c.l.b16 %v248
    %v285 = vunpack.c.l.b16 %v249
    %v286 = vunpack.c.l.b16 %v250
    %v287 = vunpack.c.l.b16 %v251
    %v288 = vunpack.c.l.b16 %v252
    %v289 = vpack.c.b16 %v274, %v273
    %v290 = vpack.c.b16 %v276, %v275
    %v291 = vpack.c.b16 %v278, %v277
    %v292 = vpack.c.b16 %v280, %v279
    %v293 = vpack.c.b16 %v282, %v281
    %v294 = vpack.c.b16 %v284, %v283
    %v295 = vpack.c.b16 %v286, %v285
    %v296 = vpack.c.b16 %v288, %v287
    %305 = vmatprep.subr.bf16.mxu0 0
    %306 = vmatpush1.bf16.msra.mxu0 %v289
    %307 = vmatprep.subr.bf16.mxu0 0
    %308 = vmatpush1.bf16.msra.mxu0 %v290
    %309 = vmatprep.subr.bf16.mxu0 0
    %310 = vmatpush1.bf16.msra.mxu0 %v291
    %311 = vmatprep.subr.bf16.mxu0 0
    %312 = vmatpush1.bf16.msra.mxu0 %v292
    %313 = vmatprep.subr.bf16.mxu0 0
    %314 = vmatpush1.bf16.msra.mxu0 %v293
    %315 = vmatprep.subr.bf16.mxu0 0
    %316 = vmatpush1.bf16.msra.mxu0 %v294
    %317 = vmatprep.subr.bf16.mxu0 0
    %318 = vmatpush1.bf16.msra.mxu0 %v295
    %319 = vmatprep.subr.bf16.mxu0 0
    %320 = vmatpush1.bf16.msra.mxu0 %v296
    %321 = vmatprep.subr.bf16.mxu0 0
    %322 = vmatpush1.bf16.msra.mxu0 0
    %323 = vmatprep.subr.bf16.mxu0 0
    %324 = vmatpush1.bf16.msra.mxu0 0
    %325 = vmatprep.subr.bf16.mxu0 0
    %326 = vmatpush1.bf16.msra.mxu0 0
    %327 = vmatprep.subr.bf16.mxu0 0
    %328 = vmatpush1.bf16.msra.mxu0 0
    %329 = vmatprep.subr.bf16.mxu0 0
    %330 = vmatpush1.bf16.msra.mxu0 0
    %331 = vmatprep.subr.bf16.mxu0 0
    %332 = vmatpush1.bf16.msra.mxu0 0
    %333 = vmatprep.subr.bf16.mxu0 0
    %334 = vmatpush1.bf16.msra.mxu0 0
    %335 = vmatprep.subr.bf16.mxu0 0
    %336 = vmatpush1.bf16.msra.mxu0 0
    %337 = vmatprep.mubr.bf16.mxu0 0
    %338 = vmatmul.mubr.bf16.gmra.mrb[0].mxu0 %v236
    %v339 = vpop.f32.mrb[0].mxu0
    %v340 = vadd.f32 %v256, %v339
    %v341 = vpop.f32.mrb[0].mxu0
    %v342 = vpop.f32.mrb[0].mxu0
    %v343 = vadd.f32 %v256, %v342
    %v344 = vpop.f32.mrb[0].mxu0
    %345 = vdwg.mxu0
    %346 = vmax.xlane.f32.xlu0 %v340
    %v347 = vpop.xlane.xlu0 %346
    %348 = vmax.xlane.f32.xlu0 %v343
    %v349 = vpop.xlane.xlu0 %348
    %v350 = vsub.f32 %v340, %v347
    %v351 = vsub.f32 %v343, %v349
    %v352 = vmul.f32 %v350, 1.442695
    %v353 = vpow.pop %v352
    %v354 = vmul.f32 %v351, 1.442695
    %v355 = vpow.pop %v354
    %356 = vadd.xlane.f32.xlu0 %v353
    %v357 = vpop.xlane.xlu0 %356
    %358 = vadd.xlane.f32.xlu0 %v355
    %v359 = vpop.xlane.xlu0 %358
    %v360 = vlog2.pop %v357
    %v361 = vmul.f32 %v360, 0.6931472
    %v362 = vlog2.pop %v359
    %v363 = vmul.f32 %v362, 0.6931472
    %v364 = vsub.f32 %v350, %v361
    %v365 = vsub.f32 %v351, %v363
    %v366 = vpack.c.bf16 %v365, %v364
    %v368 = vunpack.c.l.b16 %v366
    %v369 = vunpack.c.h.b16 %v366
    %v370 = vpack.c.b16 %v368, %v368
    %v371 = vpack.c.b16 %v369, %v369
    %374 = vst [vmem:[%s5] sm:$0xf] %v370
    %375 = vst [vmem:[%s5 + $0x4] sm:$0xf] %v371
    // Predicated region
    $region26: #{simple_net_forward.1} parent=1 // pred_check
      _
    $region27: #{simple_net_forward.1} parent=1 // pred_check_branch
      %377 = sbr.rel (0) target = $region29
    $region28: #{simple_net_forward.1} parent=1 // pred_region
      _
    $region29: #{simple_net_forward.1} parent=1 // pred_fallthru
      _
    // Predicated region
    $region30: #{simple_net_forward.1} parent=1 // pred_check
      _
    $region31: #{simple_net_forward.1} parent=1 // pred_check_branch
      %379 = sbr.rel (0) target = $region33
    $region32: #{simple_net_forward.1} parent=1 // pred_region
      _
    $region33: #{simple_net_forward.1} parent=1 // pred_fallthru
      _
    %380 = vsyncpa [#allocation3], 1

</llo_original>
